<compile_context>
chip_gen: v7x
topology: tpu7x:2x2x1
jax: 0.10.0
libtpu: 0.0.40
codegen_flags: <defaults>
</compile_context>

<pallas_src>
import functools

import jax
import jax.numpy as jnp
from jax import lax
from jax.experimental import pallas as pl
from jax.experimental.pallas import tpu as pltpu


def _conv_bn_relu_pool_kernel(x_ref, w_ref, g_ref, b_ref, o_ref,
                              sum_ref, ssq_ref, a_ref, d_ref, *maybe_cache,
                              rows_per_tile, l_pad, l_out, inv_count,
                              inv_lout, eps, cache_conv):
    # x_ref: (B_tile*L_pad, K*Cin) bf16      w_ref: (K*Cin, C_pad) bf16
    # g_ref/b_ref: (1, C_pad) f32            o_ref: (B_tile, C_pad) f32
    # sum/ssq/a/d: (1, C_pad) f32 persistent scratch
    # maybe_cache: optional (G, B_tile*L_pad, C_pad) f32 conv-output cache
    phase = pl.program_id(0)   # 0 = accumulate BN stats, 1 = normalize + ReLU + pool
    n = pl.program_id(1)       # batch-tile index
    cache_ref = maybe_cache[0] if maybe_cache else None
    c_pad = o_ref.shape[-1]

    def conv():
        # One fat MXU matmul: contraction K*Cin, M = B_tile*L_pad, f32 accumulation.
        return jnp.dot(x_ref[...], w_ref[...], preferred_element_type=jnp.float32)

    # NOTE: the Conv1d bias is omitted on purpose -- train-mode BatchNorm subtracts the
    # per-channel batch mean right after the conv, so the bias cancels exactly.

    # ---- Phase 0: per-channel sum / sum-of-squares over all real (N, L_out) positions ----
    # (zero-padded L / batch rows produce exactly-zero conv output, so they add nothing;
    #  inv_count uses the real N*L_out.)
    @pl.when(phase == 0)
    def _accumulate_stats():
        acc = conv()
        if cache_conv:
            cache_ref[n] = acc

        @pl.when(n == 0)
        def _init():
            sum_ref[...] = jnp.zeros_like(sum_ref)
            ssq_ref[...] = jnp.zeros_like(ssq_ref)

        sum_ref[...] += jnp.sum(acc, axis=0, keepdims=True)
        ssq_ref[...] += jnp.sum(acc * acc, axis=0, keepdims=True)

    # ---- Phase 1: fold BN into one affine, ReLU, average pool, lane-dense store ----
    @pl.when(phase == 1)
    def _normalize_relu_pool():
        @pl.when(n == 0)
        def _fold_affine():
            mean = sum_ref[...] * inv_count
            var = jnp.maximum(ssq_ref[...] * inv_count - mean * mean, 0.0)  # biased var, clamped
            a = g_ref[...] * lax.rsqrt(var + eps)                           # rsqrt -> EUP slot
            a_ref[...] = a
            d_ref[...] = b_ref[...] - a * mean

        acc = cache_ref[n] if cache_conv else conv()
        a = a_ref[...]                                   # hoisted single loads, no inner loop
        d = d_ref[...]
        y = jnp.maximum(acc * a + d, 0.0)                # fused BN affine + ReLU, f32
        y = y.reshape(rows_per_tile, l_pad, c_pad)       # sublane-aligned split (l_pad % 8 == 0)
        pooled = jnp.sum(y, axis=1)                      # (B_tile, C_pad) aligned reduction
        if l_pad != l_out:
            # Each zero-padded conv position contributes exactly max(d, 0); remove them.
            pooled = pooled - float(l_pad - l_out) * jnp.maximum(d, 0.0)
        o_ref[...] = (pooled * inv_lout).astype(o_ref.dtype)


def conv_avg_pool(x, weight, bias, gamma, beta, eps=1e-5):
    """x: (N, C_in, L) f32; weight: (C_out, C_in, K); bias/gamma/beta: (C_out,) -> (N, C_out)."""
    del bias  # exactly cancelled by train-mode BatchNorm mean subtraction (see kernel comment)
    N, Cin, L = x.shape
    Cout, _, K = weight.shape
    assert L >= K, "Conv1d with padding=0 requires L >= kernel_size"
    L_out = L - K + 1                                   # stride=1, padding=0
    L_pad = ((L_out + 7) // 8) * 8                      # sublane-aligned per-row length
    KC = K * Cin                                        # fused contraction dim
    C_pad = ((Cout + 127) // 128) * 128                 # lane-dense channel dim (>=128)

    # --- batch rows per grid step (B_tile): big tiles to amortize grid overhead; multiple of 8
    #     (or the full batch) so the output block obeys the (8, 128) rule. -------------------
    if N <= 8:
        B_tile = N
    else:
        # dbl-buffered bf16 im2col tile + ~2 f32 acc-sized temporaries per row
        row_bytes = L_pad * (2 * KC * 2 + 2 * C_pad * 4)
        budget = 12 << 20
        B_tile = max(8, min((budget // row_bytes) // 8 * 8, ((N + 7) // 8) * 8))
    G = -(-N // B_tile)                                 # number of batch tiles
    N_pad = G * B_tile
    tile_rows = B_tile * L_pad

    # --- host-side im2col (k-major, cin-minor), zero padding, bf16 MXU operands -------------
    x_nlc = jnp.transpose(x, (0, 2, 1))                               # (N, L, Cin)
    win = jnp.arange(L_out)[:, None] + jnp.arange(K)[None, :]         # (L_out, K)
    x_col = x_nlc[:, win, :].reshape(N, L_out, KC)                    # (N, L_out, K*Cin)
    x_col = jnp.pad(x_col, ((0, N_pad - N), (0, L_pad - L_out), (0, 0)))
    x_flat = x_col.reshape(N_pad * L_pad, KC).astype(jnp.bfloat16)    # (N_pad*L_pad, K*Cin)

    w_slab = jnp.transpose(weight, (2, 1, 0)).reshape(KC, Cout)       # [(k, cin), cout]
    w_slab = jnp.pad(w_slab, ((0, 0), (0, C_pad - Cout))).astype(jnp.bfloat16)

    g2 = jnp.pad(gamma.astype(jnp.float32), (0, C_pad - Cout)).reshape(1, C_pad)
    b2 = jnp.pad(beta.astype(jnp.float32), (0, C_pad - Cout)).reshape(1, C_pad)

    # --- conv-output VMEM cache gate: skip phase-1 MXU recompute + second x DMA when it fits -
    cache_bytes = G * tile_rows * C_pad * 4
    cache_conv = cache_bytes <= (24 << 20)              # conservative, safe on v7x's 64 MiB VMEM

    kernel = functools.partial(
        _conv_bn_relu_pool_kernel,
        rows_per_tile=B_tile, l_pad=L_pad, l_out=L_out,
        inv_count=1.0 / float(N * L_out), inv_lout=1.0 / float(L_out),
        eps=float(eps), cache_conv=cache_conv)

    scratch_shapes = [
        pltpu.VMEM((1, C_pad), jnp.float32),   # per-channel sum
        pltpu.VMEM((1, C_pad), jnp.float32),   # per-channel sum of squares
        pltpu.VMEM((1, C_pad), jnp.float32),   # folded scale a = gamma*rsqrt(var+eps)
        pltpu.VMEM((1, C_pad), jnp.float32),   # folded shift d = beta - a*mean
    ]
    if cache_conv:
        scratch_shapes.append(pltpu.VMEM((G, tile_rows, C_pad), jnp.float32))

    # VMEM sizing (double-buffered input + output, resident weights, cache, acc temps) + headroom.
    x_tile_bytes = tile_rows * KC * 2
    vmem_need = (2 * x_tile_bytes + 2 * B_tile * C_pad * 4 + KC * C_pad * 2
                 + (cache_bytes if cache_conv else 0)
                 + 6 * tile_rows * C_pad * 4 + 8 * C_pad * 4)
    vmem_limit = int(min(max(2 * vmem_need, 8 << 20), 48 << 20))

    if cache_conv:
        x_index_map = lambda p, n: (n * (1 - p), 0)     # phase 1 reads cache -> stop streaming x
    else:
        x_index_map = lambda p, n: (n, 0)

    out = pl.pallas_call(
        kernel,
        out_shape=jax.ShapeDtypeStruct((N_pad, C_pad), jnp.float32),
        grid=(2, G),                       # (phase, batch tile); phase 0 = stats, phase 1 = finalize
        in_specs=[
            pl.BlockSpec((tile_rows, KC), x_index_map),           # im2col input tile
            pl.BlockSpec((KC, C_pad), lambda p, n: (0, 0)),       # weight slab, resident
            pl.BlockSpec((1, C_pad), lambda p, n: (0, 0)),        # gamma
            pl.BlockSpec((1, C_pad), lambda p, n: (0, 0)),        # beta
        ],
        # Phase-aware output map: phase 0 revisits block 0 (never written there), so no garbage
        # HBM writebacks; phase 1 writes each block exactly once in a consecutive run.
        out_specs=pl.BlockSpec((B_tile, C_pad), lambda p, n: (p * n, 0)),
        scratch_shapes=scratch_shapes,
        compiler_params=pltpu.CompilerParams(
            # Shared stat scratch + phase ordering forbid megacore sharding of this single call.
            dimension_semantics=("arbitrary", "arbitrary"),
            vmem_limit_bytes=vmem_limit,
        ),
    )(x_flat, w_slab, g2, b2)

    return out[:N, :Cout]


def _reference(x, weight, bias, gamma, beta, eps=1e-5):
    """Pure-JAX f32 reference mirroring the PyTorch forward (train-mode BN, bias included)."""
    y = lax.conv_general_dilated(
        x, weight, window_strides=(1,), padding="VALID",
        dimension_numbers=("NCH", "OIH", "NCH"))
    y = y + bias[None, :, None]
    mean = jnp.mean(y, axis=(0, 2), keepdims=True)
    var = jnp.mean((y - mean) ** 2, axis=(0, 2), keepdims=True)
    y = (y - mean) / jnp.sqrt(var + eps)
    y = y * gamma[None, :, None] + beta[None, :, None]
    y = jnp.maximum(y, 0.0)
    return jnp.mean(y, axis=-1)  # (N, C_out)


if __name__ == "__main__":
    # Small shapes consistent with the module (kernel_size=23 needs L >= 23).
    N, C_in, C_out, L, K = 2, 4, 8, 64, 23

    key = jax.random.PRNGKey(0)
    kx, kw, kb, kg, kbeta = jax.random.split(key, 5)

    x = jax.random.normal(kx, (N, C_in, L), dtype=jnp.float32)
    weight = jax.random.normal(kw, (C_out, C_in, K), dtype=jnp.float32) * 0.05
    bias = jax.random.normal(kb, (C_out,), dtype=jnp.float32) * 0.05
    gamma = jnp.ones((C_out,), dtype=jnp.float32) + 0.1 * jax.random.normal(kg, (C_out,))
    beta = 0.1 * jax.random.normal(kbeta, (C_out,), dtype=jnp.float32)

    out = conv_avg_pool(x, weight, bias, gamma, beta)
    out = jax.block_until_ready(out)
    assert out.shape == (N, C_out)

    # Reference on bf16-quantized matmul operands (the kernel feeds the MXU bf16 with f32 accum).
    x_q = x.astype(jnp.bfloat16).astype(jnp.float32)
    w_q = weight.astype(jnp.bfloat16).astype(jnp.float32)
    ref = _reference(x_q, w_q, bias, gamma, beta)
    assert jnp.allclose(out, ref, atol=2e-3, rtol=2e-3), "mismatch vs reference"

    print("KERNEL_OK")
</pallas_src>

<mosaic_0001>
module attributes {stable_mosaic.version = 11 : i64} {
  func.func @_conv_bn_relu_pool_kernel(%arg0: i32, %arg1: i32, %arg2: memref<96x92xbf16, #tpu.memory_space<vmem>>, %arg3: memref<92x128xbf16, #tpu.memory_space<vmem>>, %arg4: memref<1x128xf32, #tpu.memory_space<vmem>>, %arg5: memref<1x128xf32, #tpu.memory_space<vmem>>, %arg6: memref<2x128xf32, #tpu.memory_space<vmem>>, %arg7: memref<1x128xf32, #tpu.memory_space<vmem>>, %arg8: memref<1x128xf32, #tpu.memory_space<vmem>>, %arg9: memref<1x128xf32, #tpu.memory_space<vmem>>, %arg10: memref<1x128xf32, #tpu.memory_space<vmem>>, %arg11: memref<1x96x128xf32, #tpu.memory_space<vmem>>) attributes {dimension_semantics = [#tpu.dimension_semantics<arbitrary>, #tpu.dimension_semantics<arbitrary>], iteration_bounds = array<i64: 2, 1>, scalar_prefetch = 0 : i64, scratch_operands = 5 : i64, tpu.core_type = #tpu.core_type<tc>, window_params = [{transform_indices = @transform_0, window_bounds = array<i64: 96, 92>}, {pipeline_mode = #tpu.pipeline_mode<synchronous>, transform_indices = @transform_1, window_bounds = array<i64: 92, 128>}, {pipeline_mode = #tpu.pipeline_mode<synchronous>, transform_indices = @transform_2, window_bounds = array<i64: 1, 128>}, {pipeline_mode = #tpu.pipeline_mode<synchronous>, transform_indices = @transform_3, window_bounds = array<i64: 1, 128>}, {transform_indices = @transform_4, window_bounds = array<i64: 2, 128>}]} {
    %c0_i32 = arith.constant 0 : i32
    %0 = arith.cmpi eq, %arg0, %c0_i32 : i32
    %1 = arith.extui %0 : i1 to i32
    %c0_i32_0 = arith.constant 0 : i32
    %2 = arith.cmpi ne, %1, %c0_i32_0 : i32
    scf.if %2 {
      %c0 = arith.constant 0 : index
      %c0_2 = arith.constant 0 : index
      %6 = vector.load %arg2[%c0, %c0_2] : memref<96x92xbf16, #tpu.memory_space<vmem>>, vector<96x92xbf16>
      %c0_3 = arith.constant 0 : index
      %c0_4 = arith.constant 0 : index
      %7 = vector.load %arg3[%c0_3, %c0_4] : memref<92x128xbf16, #tpu.memory_space<vmem>>, vector<92x128xbf16>
      %cst = arith.constant dense<0.000000e+00> : vector<96x128xf32>
      %8 = tpu.matmul %6, %7, %cst {dimension_numbers = #tpu.dot_dimension_numbers<[1], [0], [0], [1], [0, 0, 1, 1], [], []>} : vector<96x92xbf16>, vector<92x128xbf16>, vector<96x128xf32> -> vector<96x128xf32>
      %9 = arith.index_cast %arg1 : i32 to index
      %c0_5 = arith.constant 0 : index
      %c0_6 = arith.constant 0 : index
      %10 = vector.load %arg11[%9, %c0_5, %c0_6] : memref<1x96x128xf32, #tpu.memory_space<vmem>>, vector<1x96x128xf32>
      %11 = vector.shape_cast %10 : vector<1x96x128xf32> to vector<96x128xf32>
      %12 = vector.shape_cast %8 : vector<96x128xf32> to vector<1x96x128xf32>
      tpu.vector_store %arg11[%9, %c0_5, %c0_6], %12 {strides = array<i32>} : memref<1x96x128xf32, #tpu.memory_space<vmem>>, vector<1x96x128xf32>,
      %c0_i32_7 = arith.constant 0 : i32
      %13 = arith.cmpi eq, %arg1, %c0_i32_7 : i32
      %14 = arith.extui %13 : i1 to i32
      %c0_i32_8 = arith.constant 0 : i32
      %15 = arith.cmpi ne, %14, %c0_i32_8 : i32
      scf.if %15 {
        %cst_19 = arith.constant 0.000000e+00 : f32
        %27 = vector.broadcast %cst_19 : f32 to vector<1x128xf32>
        %c0_20 = arith.constant 0 : index
        %c0_21 = arith.constant 0 : index
        %28 = vector.load %arg7[%c0_20, %c0_21] : memref<1x128xf32, #tpu.memory_space<vmem>>, vector<1x128xf32>
        tpu.vector_store %arg7[%c0_20, %c0_21], %27 {strides = array<i32>} : memref<1x128xf32, #tpu.memory_space<vmem>>, vector<1x128xf32>,
        %cst_22 = arith.constant 0.000000e+00 : f32
        %29 = vector.broadcast %cst_22 : f32 to vector<1x128xf32>
        %c0_23 = arith.constant 0 : index
        %c0_24 = arith.constant 0 : index
        %30 = vector.load %arg8[%c0_23, %c0_24] : memref<1x128xf32, #tpu.memory_space<vmem>>, vector<1x128xf32>
        tpu.vector_store %arg8[%c0_23, %c0_24], %29 {strides = array<i32>} : memref<1x128xf32, #tpu.memory_space<vmem>>, vector<1x128xf32>,
      } else {
      }
      %c0_9 = arith.constant 0 : index
      %c0_10 = arith.constant 0 : index
      %16 = vector.load %arg7[%c0_9, %c0_10] : memref<1x128xf32, #tpu.memory_space<vmem>>, vector<1x128xf32>
      %cst_11 = arith.constant dense<0.000000e+00> : vector<128xf32>
      %17 = vector.multi_reduction <add>, %8, %cst_11 [0] : vector<96x128xf32> to vector<128xf32>
      %18 = vector.shape_cast %17 : vector<128xf32> to vector<1x128xf32>
      %19 = arith.addf %16, %18 : vector<1x128xf32>
      %c0_12 = arith.constant 0 : index
      %c0_13 = arith.constant 0 : index
      %20 = vector.load %arg7[%c0_12, %c0_13] : memref<1x128xf32, #tpu.memory_space<vmem>>, vector<1x128xf32>
      tpu.vector_store %arg7[%c0_12, %c0_13], %19 {strides = array<i32>} : memref<1x128xf32, #tpu.memory_space<vmem>>, vector<1x128xf32>,
      %c0_14 = arith.constant 0 : index
      %c0_15 = arith.constant 0 : index
      %21 = vector.load %arg8[%c0_14, %c0_15] : memref<1x128xf32, #tpu.memory_space<vmem>>, vector<1x128xf32>
      %22 = arith.mulf %8, %8 : vector<96x128xf32>
      %cst_16 = arith.constant dense<0.000000e+00> : vector<128xf32>
      %23 = vector.multi_reduction <add>, %22, %cst_16 [0] : vector<96x128xf32> to vector<128xf32>
      %24 = vector.shape_cast %23 : vector<128xf32> to vector<1x128xf32>
      %25 = arith.addf %21, %24 : vector<1x128xf32>
      %c0_17 = arith.constant 0 : index
      %c0_18 = arith.constant 0 : index
      %26 = vector.load %arg8[%c0_17, %c0_18] : memref<1x128xf32, #tpu.memory_space<vmem>>, vector<1x128xf32>
      tpu.vector_store %arg8[%c0_17, %c0_18], %25 {strides = array<i32>} : memref<1x128xf32, #tpu.memory_space<vmem>>, vector<1x128xf32>,
    } else {
    }
    %c1_i32 = arith.constant 1 : i32
    %3 = arith.cmpi eq, %arg0, %c1_i32 : i32
    %4 = arith.extui %3 : i1 to i32
    %c0_i32_1 = arith.constant 0 : i32
    %5 = arith.cmpi ne, %4, %c0_i32_1 : i32
    scf.if %5 {
      %c0_i32_2 = arith.constant 0 : i32
      %6 = arith.cmpi eq, %arg1, %c0_i32_2 : i32
      %7 = arith.extui %6 : i1 to i32
      %c0_i32_3 = arith.constant 0 : i32
      %8 = arith.cmpi ne, %7, %c0_i32_3 : i32
      scf.if %8 {
        %c0_15 = arith.constant 0 : index
        %c0_16 = arith.constant 0 : index
        %31 = vector.load %arg7[%c0_15, %c0_16] : memref<1x128xf32, #tpu.memory_space<vmem>>, vector<1x128xf32>
        %cst_17 = arith.constant 0.0119047621 : f32
        %32 = vector.broadcast %cst_17 : f32 to vector<1x128xf32>
        %33 = arith.mulf %31, %32 : vector<1x128xf32>
        %c0_18 = arith.constant 0 : index
        %c0_19 = arith.constant 0 : index
        %34 = vector.load %arg8[%c0_18, %c0_19] : memref<1x128xf32, #tpu.memory_space<vmem>>, vector<1x128xf32>
        %cst_20 = arith.constant 0.0119047621 : f32
        %35 = vector.broadcast %cst_20 : f32 to vector<1x128xf32>
        %36 = arith.mulf %34, %35 : vector<1x128xf32>
        %37 = arith.mulf %33, %33 : vector<1x128xf32>
        %38 = arith.subf %36, %37 : vector<1x128xf32>
        %cst_21 = arith.constant 0.000000e+00 : f32
        %39 = vector.broadcast %cst_21 : f32 to vector<1x128xf32>
        %40 = arith.maximumf %38, %39 : vector<1x128xf32>
        %c0_22 = arith.constant 0 : index
        %c0_23 = arith.constant 0 : index
        %41 = vector.load %arg4[%c0_22, %c0_23] : memref<1x128xf32, #tpu.memory_space<vmem>>, vector<1x128xf32>
        %cst_24 = arith.constant 9.99999974E-6 : f32
        %42 = vector.broadcast %cst_24 : f32 to vector<1x128xf32>
        %43 = arith.addf %40, %42 : vector<1x128xf32>
        %44 = math.rsqrt %43 : vector<1x128xf32>
        %45 = arith.mulf %41, %44 : vector<1x128xf32>
        %c0_25 = arith.constant 0 : index
        %c0_26 = arith.constant 0 : index
        %46 = vector.load %arg9[%c0_25, %c0_26] : memref<1x128xf32, #tpu.memory_space<vmem>>, vector<1x128xf32>
        tpu.vector_store %arg9[%c0_25, %c0_26], %45 {strides = array<i32>} : memref<1x128xf32, #tpu.memory_space<vmem>>, vector<1x128xf32>,
        %c0_27 = arith.constant 0 : index
        %c0_28 = arith.constant 0 : index
        %47 = vector.load %arg5[%c0_27, %c0_28] : memref<1x128xf32, #tpu.memory_space<vmem>>, vector<1x128xf32>
        %48 = arith.mulf %45, %33 : vector<1x128xf32>
        %49 = arith.subf %47, %48 : vector<1x128xf32>
        %c0_29 = arith.constant 0 : index
        %c0_30 = arith.constant 0 : index
        %50 = vector.load %arg10[%c0_29, %c0_30] : memref<1x128xf32, #tpu.memory_space<vmem>>, vector<1x128xf32>
        tpu.vector_store %arg10[%c0_29, %c0_30], %49 {strides = array<i32>} : memref<1x128xf32, #tpu.memory_space<vmem>>, vector<1x128xf32>,
      } else {
      }
      %9 = arith.index_cast %arg1 : i32 to index
      %c0 = arith.constant 0 : index
      %c0_4 = arith.constant 0 : index
      %10 = vector.load %arg11[%9, %c0, %c0_4] : memref<1x96x128xf32, #tpu.memory_space<vmem>>, vector<1x96x128xf32>
      %11 = vector.shape_cast %10 : vector<1x96x128xf32> to vector<96x128xf32>
      %c0_5 = arith.constant 0 : index
      %c0_6 = arith.constant 0 : index
      %12 = vector.load %arg9[%c0_5, %c0_6] : memref<1x128xf32, #tpu.memory_space<vmem>>, vector<1x128xf32>
      %c0_7 = arith.constant 0 : index
      %c0_8 = arith.constant 0 : index
      %13 = vector.load %arg10[%c0_7, %c0_8] : memref<1x128xf32, #tpu.memory_space<vmem>>, vector<1x128xf32>
      %14 = vector.broadcast %12 : vector<1x128xf32> to vector<96x128xf32>
      %15 = arith.mulf %11, %14 : vector<96x128xf32>
      %16 = vector.broadcast %13 : vector<1x128xf32> to vector<96x128xf32>
      %17 = arith.addf %15, %16 : vector<96x128xf32>
      %cst = arith.constant 0.000000e+00 : f32
      %18 = vector.broadcast %cst : f32 to vector<96x128xf32>
      %19 = arith.maximumf %17, %18 : vector<96x128xf32>
      %20 = vector.shape_cast %19 : vector<96x128xf32> to vector<2x48x128xf32>
      %cst_9 = arith.constant dense<0.000000e+00> : vector<2x128xf32>
      %21 = vector.multi_reduction <add>, %20, %cst_9 [1] : vector<2x48x128xf32> to vector<2x128xf32>
      %cst_10 = arith.constant 0.000000e+00 : f32
      %22 = vector.broadcast %cst_10 : f32 to vector<1x128xf32>
      %23 = arith.maximumf %13, %22 : vector<1x128xf32>
      %cst_11 = arith.constant 6.000000e+00 : f32
      %24 = vector.broadcast %cst_11 : f32 to vector<1x128xf32>
      %25 = arith.mulf %24, %23 : vector<1x128xf32>
      %26 = vector.broadcast %25 : vector<1x128xf32> to vector<2x128xf32>
      %27 = arith.subf %21, %26 : vector<2x128xf32>
      %cst_12 = arith.constant 0.0238095243 : f32
      %28 = vector.broadcast %cst_12 : f32 to vector<2x128xf32>
      %29 = arith.mulf %27, %28 : vector<2x128xf32>
      %c0_13 = arith.constant 0 : index
      %c0_14 = arith.constant 0 : index
      %30 = vector.load %arg6[%c0_13, %c0_14] : memref<2x128xf32, #tpu.memory_space<vmem>>, vector<2x128xf32>
      tpu.vector_store %arg6[%c0_13, %c0_14], %29 {strides = array<i32>} : memref<2x128xf32, #tpu.memory_space<vmem>>, vector<2x128xf32>,
    } else {
    }
    return
  }
  func.func @transform_0(%arg0: i32, %arg1: i32) -> (i32, i32) {
    %c1_i32 = arith.constant 1 : i32
    %0 = arith.subi %c1_i32, %arg0 : i32
    %1 = arith.muli %arg1, %0 : i32
    %c0_i32 = arith.constant 0 : i32
    %c0_i32_0 = arith.constant 0 : i32
    return %1, %c0_i32 : i32, i32
  }
  func.func @transform_1(%arg0: i32, %arg1: i32) -> (i32, i32) {
    %c0_i32 = arith.constant 0 : i32
    %c0_i32_0 = arith.constant 0 : i32
    %c0_i32_1 = arith.constant 0 : i32
    return %c0_i32, %c0_i32_0 : i32, i32
  }
  func.func @transform_2(%arg0: i32, %arg1: i32) -> (i32, i32) {
    %c0_i32 = arith.constant 0 : i32
    %c0_i32_0 = arith.constant 0 : i32
    %c0_i32_1 = arith.constant 0 : i32
    return %c0_i32, %c0_i32_0 : i32, i32
  }
  func.func @transform_3(%arg0: i32, %arg1: i32) -> (i32, i32) {
    %c0_i32 = arith.constant 0 : i32
    %c0_i32_0 = arith.constant 0 : i32
    %c0_i32_1 = arith.constant 0 : i32
    return %c0_i32, %c0_i32_0 : i32, i32
  }
  func.func @transform_4(%arg0: i32, %arg1: i32) -> (i32, i32) {
    %0 = arith.muli %arg0, %arg1 : i32
    %c0_i32 = arith.constant 0 : i32
    %c0_i32_0 = arith.constant 0 : i32
    return %0, %c0_i32 : i32, i32
  }
}

</mosaic_0001>

<llo_original>
// kernel: tpu_custom_call.1
$region0: #{tpu_custom_call.1}
  #allocation0 [shape = 'u32[]', space=smem, size = 0x4, offset = 0x4, fixed_abs, tag = 'smem constant byte address 0x4 - core index']
  #allocation1 [shape = 'u32[144,128]{1,0:T(1,128)}', space=vmem, size = 0x12000, scoped, tag = 'internal scratch']
  #allocation2 [shape = 'f32[1,128]{1,0:T(1,128)}', space=vmem, size = 0x200, scoped, tag = 'scratch operand']
  #allocation3 [shape = 'f32[1,128]{1,0:T(1,128)}', space=vmem, size = 0x200, scoped, tag = 'scratch operand']
  #allocation4 [shape = 'f32[1,128]{1,0:T(1,128)}', space=vmem, size = 0x200, scoped, tag = 'scratch operand']
  #allocation5 [shape = 'f32[1,128]{1,0:T(1,128)}', space=vmem, size = 0x200, scoped, tag = 'scratch operand']
  #allocation6 [shape = 'f32[1,96,128]{2,1,0:T(8,128)}', space=vmem, size = 0xc000, scoped, tag = 'scratch operand']
  %s0 = inlined_call_operand.hbm [shape: bf16[96,92], index: 0, kind: input, shape index: {}]
  %s1 = inlined_call_operand.hbm [shape: bf16[92,128], index: 1, kind: input, shape index: {}]
  %s2 = inlined_call_operand.vmem [shape: f32[1,128], index: 2, kind: input, shape index: {}]
  %s3 = inlined_call_operand.vmem [shape: f32[1,128], index: 3, kind: input, shape index: {}]
  %s4 = inlined_call_operand.hbm [shape: f32[2,128], index: 4, kind: output, shape index: {}]
  %s5 = sld [smem:[#allocation0]]
  $region73: #{tpu_custom_call.1} parent=0
    _
  %s7 = ssub.s32 1, %s5
  %s8 = scalar_select 0, %s7, %s5
  $region1: #{tpu_custom_call.1} parent=0
    #allocation7 [shape = 'u8[49152]{0}', space=vmem, size = 0xc000, scoped, tag = 'input window, operand 0']
    #allocation8 [shape = 's32[2]{0}', space=sflag, size = 0x8, scoped, tag = 'scoped memory for tpu_custom_call.1']
    #allocation9 [shape = 's32[2]{0}', space=sflag, size = 0x8, scoped, tag = 'scoped memory for tpu_custom_call.1']
    #allocation10 [shape = 'u8[24576]{0}', space=vmem, size = 0x6000, scoped, tag = 'input window, operand 1, single buffered']
    #allocation11 [shape = 's32[1]{0}', space=sflag, size = 0x4, scoped, tag = 'scoped memory for tpu_custom_call.1']
    #allocation12 [shape = 'u8[2048]{0}', space=vmem, size = 0x800, scoped, tag = 'output window, operand 0']
    %9 = vsyncpa [#allocation8], 0
    %s10 = scalar_lea.sflag [#allocation8], 1
    %11 = vsyncpa %s10, 0
    %12 = vsyncpa [#allocation11], 0
    %13 = vsyncpa [#allocation9], 0
    %s14 = scalar_lea.sflag [#allocation9], 1
    %15 = vsyncpa %s14, 0
    loop: start=0, step=1, limit=4
    $region2: #{tpu_custom_call.1} parent=1 // loop_pre_header
      _
    $region3: #{tpu_custom_call.1} parent=1 // loop_header
      %s17 = sphi 0, %s21
      %p18 = scmp.ge.s32.totalorder %s17, 4
      %s24 = sphi 0, %s36
      %s25 = sphi 0, %s32
      %s26 = sphi 0, %s24
      %s27 = sphi 0, %s25
      %s28 = sphi 0, %s26
      %s29 = sphi 0, %s27
      %s43 = sphi 0, %s45
      %s46 = sphi 0, %s43
      %s47 = sphi 0, %s46
      %s63 = sphi 0, %s47
      %s67 = sphi 0, %s67
      %s69 = sphi 0, %s67
      %s70 = sphi 0, %s69
      %s84 = sphi 0, %s70
      %s88 = sphi 0, %s88
      %s90 = sphi 0, %s88
      %s91 = sphi 0, %s90
      %s105 = sphi 0, %s91
      %s109 = sphi 0, %s109
      %s111 = sphi 0, %s109
      %s112 = sphi 0, %s111
      %s126 = sphi 0, %s112
      %s134 = sphi 0, %s136
      %s137 = sphi 0, %s134
      %s138 = sphi 0, %s137
      %s154 = sphi 0, %s138
    $region4: #{tpu_custom_call.1} parent=1 // loop_header_branch
      %20 = sbr.rel (%p18) target = $region8
    $region5: #{tpu_custom_call.1} parent=1 // loop_body
      %s22 = ssub.s32 %s17, 1
      %s23 = ssub.s32 %s17, 2
      %s30 = sadd.s32 1, %s25
      %p31 = scmp.ge.s32.totalorder %s30, 1
      %s32 = scalar_select %p31, 0, %s30
      %s33 = sadd.s32 1, %s24
      %s34 = scalar_select %p31, %s33, %s24
      %p35 = scmp.ge.s32.totalorder %s34, 2
      %s36 = scalar_select %p35, 0, %s34
      %s37 = ssub.s32 1, %s24
      %s38 = smul.u32 %s25, %s37
      %s39 = ssub.s32 1, %s36
      %s40 = smul.u32 %s32, %s39
      %s41 = ssub.s32 %s38, %s40
      %p42 = scmp.eq.s32.totalorder %s41, 0
      %s44 = sadd.s32 %s43, 1
      %s45 = scalar_select %p42, %s43, %s44
      %p48 = pneg %p42
      %p49 = scmp.eq.s32.totalorder %s17, 1
      %p50 = por %p48, %p49
      %p51 = scmp.ne.s32.totalorder %s43, %s46
      %p52 = scmp.eq.s32.totalorder %s17, 0
      %p53 = por %p51, %p52
      %p54 = scmp.ne.s32.totalorder %s43, %s46
      %p55 = scmp.eq.s32.totalorder %s22, 1
      %p56 = por %p54, %p55
      %p57 = scmp.ne.s32.totalorder %s46, %s47
      %p58 = scmp.eq.s32.totalorder %s22, 0
      %p59 = por %p57, %p58
      %p60 = scmp.ne.s32.totalorder %s46, %s47
      %p61 = scmp.eq.s32.totalorder %s23, 1
      %p62 = por %p60, %p61
      %p64 = scmp.ne.s32.totalorder %s47, %s63
      %p65 = scmp.eq.s32.totalorder %s23, 0
      %p66 = por %p64, %p65
      %s68 = sadd.s32 %s67, 1
      %p71 = scmp.eq.s32.totalorder %s17, 1
      %p72 = scmp.ne.s32.totalorder %s67, %s69
      %p73 = scmp.eq.s32.totalorder %s17, 0
      %p74 = por %p72, %p73
      %p75 = scmp.ne.s32.totalorder %s67, %s69
      %p76 = scmp.eq.s32.totalorder %s22, 1
      %p77 = por %p75, %p76
      %p78 = scmp.ne.s32.totalorder %s69, %s70
      %p79 = scmp.eq.s32.totalorder %s22, 0
      %p80 = por %p78, %p79
      %p81 = scmp.ne.s32.totalorder %s69, %s70
      %p82 = scmp.eq.s32.totalorder %s23, 1
      %p83 = por %p81, %p82
      %p85 = scmp.ne.s32.totalorder %s70, %s84
      %p86 = scmp.eq.s32.totalorder %s23, 0
      %p87 = por %p85, %p86
      %s89 = sadd.s32 %s88, 1
      %p92 = scmp.eq.s32.totalorder %s17, 1
      %p93 = scmp.ne.s32.totalorder %s88, %s90
      %p94 = scmp.eq.s32.totalorder %s17, 0
      %p95 = por %p93, %p94
      %p96 = scmp.ne.s32.totalorder %s88, %s90
      %p97 = scmp.eq.s32.totalorder %s22, 1
      %p98 = por %p96, %p97
      %p99 = scmp.ne.s32.totalorder %s90, %s91
      %p100 = scmp.eq.s32.totalorder %s22, 0
      %p101 = por %p99, %p100
      %p102 = scmp.ne.s32.totalorder %s90, %s91
      %p103 = scmp.eq.s32.totalorder %s23, 1
      %p104 = por %p102, %p103
      %p106 = scmp.ne.s32.totalorder %s91, %s105
      %p107 = scmp.eq.s32.totalorder %s23, 0
      %p108 = por %p106, %p107
      %s110 = sadd.s32 %s109, 1
      %p113 = scmp.eq.s32.totalorder %s17, 1
      %p114 = scmp.ne.s32.totalorder %s109, %s111
      %p115 = scmp.eq.s32.totalorder %s17, 0
      %p116 = por %p114, %p115
      %p117 = scmp.ne.s32.totalorder %s109, %s111
      %p118 = scmp.eq.s32.totalorder %s22, 1
      %p119 = por %p117, %p118
      %p120 = scmp.ne.s32.totalorder %s111, %s112
      %p121 = scmp.eq.s32.totalorder %s22, 0
      %p122 = por %p120, %p121
      %p123 = scmp.ne.s32.totalorder %s111, %s112
      %p124 = scmp.eq.s32.totalorder %s23, 1
      %p125 = por %p123, %p124
      %p127 = scmp.ne.s32.totalorder %s112, %s126
      %p128 = scmp.eq.s32.totalorder %s23, 0
      %p129 = por %p127, %p128
      %s130 = smul.u32 %s24, %s25
      %s131 = smul.u32 %s36, %s32
      %s132 = ssub.s32 %s130, %s131
      %p133 = scmp.eq.s32.totalorder %s132, 0
      %s135 = sadd.s32 %s134, 1
      %s136 = scalar_select %p133, %s134, %s135
      %p139 = pneg %p133
      %p140 = scmp.eq.s32.totalorder %s17, 1
      %p141 = por %p139, %p140
      %p142 = scmp.ne.s32.totalorder %s134, %s137
      %p143 = scmp.eq.s32.totalorder %s17, 0
      %p144 = por %p142, %p143
      %p145 = scmp.ne.s32.totalorder %s134, %s137
      %p146 = scmp.eq.s32.totalorder %s22, 1
      %p147 = por %p145, %p146
      %p148 = scmp.ne.s32.totalorder %s137, %s138
      %p149 = scmp.eq.s32.totalorder %s22, 0
      %p150 = por %p148, %p149
      %p151 = scmp.ne.s32.totalorder %s137, %s138
      %p152 = scmp.eq.s32.totalorder %s23, 1
      %p153 = por %p151, %p152
      %p155 = scmp.ne.s32.totalorder %s138, %s154
      %p156 = scmp.eq.s32.totalorder %s23, 0
      %p157 = por %p155, %p156
      %p158 = scmp.le.s32.totalorder 1, %s17
      %p159 = scmp.lt.s32.totalorder %s17, 3
      %p160 = pnand %p158, %p159
      %p161 = pneg %p160
      // Predicated region
      $region9: #{tpu_custom_call.1} parent=5 // pred_check
        _
      $region10: #{tpu_custom_call.1} parent=5 // pred_check_branch
        %163 = sbr.rel (%p160) target = $region12
      $region11: #{tpu_custom_call.1} parent=5 // pred_region
        %s164 = ssub.s32 %s17, 1
        // Predicated region
        $region13: #{tpu_custom_call.1} parent=11 // pred_check
          %p165 = pneg %p80
        $region14: #{tpu_custom_call.1} parent=11 // pred_check_branch
          %167 = sbr.rel (%p165) target = $region16
        $region15: #{tpu_custom_call.1} parent=11 // pred_region
          %s169 = ssub.s32 768, 768
          %170 = vsyncadd [#allocation11], %s169
          %s171 = sshll.u32 [#allocation10], 4
          %s172 = int_to_ptr.vmem [resolvable:$true] %s171
          %177 = dma.hbm_to_vmem [thread:$0]  %s1, 768, %s172, [#allocation11], 64, 64, 4
        $region16: #{tpu_custom_call.1} parent=11 // pred_fallthru
          _
        // Predicated region
        $region17: #{tpu_custom_call.1} parent=11 // pred_check
          %p178 = pneg %p101
        $region18: #{tpu_custom_call.1} parent=11 // pred_check_branch
          %180 = sbr.rel (%p178) target = $region20
        $region19: #{tpu_custom_call.1} parent=11 // pred_region
          _
        $region20: #{tpu_custom_call.1} parent=11 // pred_fallthru
          _
        // Predicated region
        $region21: #{tpu_custom_call.1} parent=11 // pred_check
          %p181 = pneg %p122
        $region22: #{tpu_custom_call.1} parent=11 // pred_check_branch
          %183 = sbr.rel (%p181) target = $region24
        $region23: #{tpu_custom_call.1} parent=11 // pred_region
          _
        $region24: #{tpu_custom_call.1} parent=11 // pred_fallthru
          _
      $region12: #{tpu_custom_call.1} parent=5 // pred_fallthru
        _
      %p184 = scmp.lt.s32.totalorder %s17, 2
      // Predicated region
      $region25: #{tpu_custom_call.1} parent=5 // pred_check
        %p185 = pneg %p184
      $region26: #{tpu_custom_call.1} parent=5 // pred_check_branch
        %187 = sbr.rel (%p185) target = $region28
      $region27: #{tpu_custom_call.1} parent=5 // pred_region
        // Predicated region
        $region29: #{tpu_custom_call.1} parent=27 // pred_check
          %p188 = pneg %p53
        $region30: #{tpu_custom_call.1} parent=27 // pred_check_branch
          %190 = sbr.rel (%p188) target = $region32
        $region31: #{tpu_custom_call.1} parent=27 // pred_region
          %s191 = sand.u32 %s43, 1
          %s192 = scalar_lea.sflag [#allocation8], %s191
          %s193 = sand.u32 %s43, 1
          %s194 = smul.addr %s193, 48
          %s195 = scalar_lea.vmem [#allocation7], %s194
          %s196 = ssub.s32 1, %s24
          %s197 = smul.u32 %s25, %s196
          %s198 = smul.u32 12, %s197
          %s200 = ssub.s32 768, 768
          %201 = vsyncadd %s192, %s200
          %s202 = smul.addr %s198, 64
          %s203 = scalar_lea.hbm %s0, %s202
          %s204 = sshll.u32 %s195, 4
          %s205 = int_to_ptr.vmem [resolvable:$true] %s204
          %210 = dma.hbm_to_vmem [thread:$0]  %s203, 768, %s205, %s192, 64, 64, 4
        $region32: #{tpu_custom_call.1} parent=27 // pred_fallthru
          _
      $region28: #{tpu_custom_call.1} parent=5 // pred_fallthru
        _
      %p211 = scmp.le.s32.totalorder 1, %s17
      %p212 = scmp.lt.s32.totalorder %s17, 3
      %p213 = pnand %p211, %p212
      %p214 = pneg %p213
      // Predicated region
      $region33: #{tpu_custom_call.1} parent=5 // pred_check
        _
      $region34: #{tpu_custom_call.1} parent=5 // pred_check_branch
        %216 = sbr.rel (%p213) target = $region36
      $region35: #{tpu_custom_call.1} parent=5 // pred_region
        %s217 = ssub.s32 %s17, 1
        %s218 = sand.u32 %s46, 1
        %s219 = scalar_lea.sflag [#allocation8], %s218
        %s220 = sand.u32 %s46, 1
        %s221 = smul.addr %s220, 48
        %s222 = scalar_lea.vmem [#allocation7], %s221
        // Predicated region
        $region37: #{tpu_custom_call.1} parent=35 // pred_check
          %p223 = pneg %p59
        $region38: #{tpu_custom_call.1} parent=35 // pred_check_branch
          %225 = sbr.rel (%p223) target = $region40
        $region39: #{tpu_custom_call.1} parent=35 // pred_region
          %226 = dma.done %s219, 768
        $region40: #{tpu_custom_call.1} parent=35 // pred_fallthru
          _
        // Predicated region
        $region41: #{tpu_custom_call.1} parent=35 // pred_check
          %p227 = pneg %p80
        $region42: #{tpu_custom_call.1} parent=35 // pred_check_branch
          %229 = sbr.rel (%p227) target = $region44
        $region43: #{tpu_custom_call.1} parent=35 // pred_region
          %230 = dma.done [#allocation11], 768
        $region44: #{tpu_custom_call.1} parent=35 // pred_fallthru
          _
        %s231 = sand.u32 %s46, 1
        %s232 = scalar_lea.sflag [#allocation8], %s231
        %s233 = sand.u32 %s46, 1
        %s234 = smul.addr %s233, 48
        %s235 = scalar_lea.vmem [#allocation7], %s234
        %p236 = pneg %p59
        %p237 = pneg %p56
        %p238 = pneg %p80
        %p239 = pneg %p77
        %p240 = pneg %p101
        %p241 = pneg %p98
        %p242 = pneg %p122
        %p243 = pneg %p119
        %p244 = pneg %p150
        %p245 = pneg %p147
        %s246 = sand.u32 %s137, 1
        %s247 = scalar_lea.sflag [#allocation9], %s246
        %s248 = sand.u32 %s137, 1
        %s249 = smul.addr %s248, 2
        %s250 = scalar_lea.vmem [#allocation12], %s249
        %s251 = ssub.s32 1, %s26
        %s252 = smul.u32 %s27, %s251
        %s253 = smul.u32 12, %s252
        %s254 = smul.u32 %s26, %s27
        %p256 = scmp.eq.s32.totalorder %s26, 0
        // Predicated region
        $region45: #{tpu_custom_call.1} parent=35 // pred_check
          %p257 = pneg %p256
        $region46: #{tpu_custom_call.1} parent=35 // pred_check_branch
          %259 = sbr.rel (%p257) target = $region48
        $region47: #{tpu_custom_call.1} parent=35 // pred_region
          %v260 = vld [vmem:[%s222] sm:$0xf]
          %v261 = vld [vmem:[%s222 + $0x4] sm:$0xf]
          %v262 = vld [vmem:[%s222 + $0x8] sm:$0xf]
          %v263 = vld [vmem:[%s222 + $0xc] sm:$0xf]
          %v264 = vld [vmem:[%s222 + $0x10] sm:$0xf]
          %v265 = vld [vmem:[%s222 + $0x14] sm:$0xf]
          %v266 = vld [vmem:[%s222 + $0x18] sm:$0xf]
          %v267 = vld [vmem:[%s222 + $0x1c] sm:$0xf]
          %v268 = vld [vmem:[%s222 + $0x20] sm:$0xf]
          %v269 = vld [vmem:[%s222 + $0x24] sm:$0xf]
          %v270 = vld [vmem:[%s222 + $0x28] sm:$0xf]
          %v271 = vld [vmem:[%s222 + $0x2c] sm:$0xf]
          %v272 = vld [vmem:[#allocation10] sm:$0xf]
          %v273 = vld [vmem:[#allocation10 + $0x4] sm:$0xf]
          %v274 = vld [vmem:[#allocation10 + $0x8] sm:$0xf]
          %v275 = vld [vmem:[#allocation10 + $0xc] sm:$0xf]
          %v276 = vld [vmem:[#allocation10 + $0x10] sm:$0xf]
          %v277 = vld [vmem:[#allocation10 + $0x14] sm:$0xf]
          %v278 = vld [vmem:[#allocation10 + $0x18] sm:$0xf]
          %v279 = vld [vmem:[#allocation10 + $0x1c] sm:$0xf]
          %v280 = vld [vmem:[#allocation10 + $0x20] sm:$0xf]
          %v281 = vld [vmem:[#allocation10 + $0x24] sm:$0xf]
          %v282 = vld [vmem:[#allocation10 + $0x28] sm:$0xf]
          %v283 = vld [vmem:[#allocation10 + $0x2c] sm:$0x3]
          %v296 = vunpack.c.l.b16 %v260
          %v297 = vunpack.c.l.b16 %v261
          %v298 = vunpack.c.l.b16 %v262
          %v299 = vunpack.c.l.b16 %v263
          %v300 = vunpack.c.l.b16 %v264
          %v301 = vunpack.c.l.b16 %v265
          %v302 = vunpack.c.l.b16 %v266
          %v303 = vunpack.c.l.b16 %v267
          %v304 = vunpack.c.l.b16 %v268
          %v305 = vunpack.c.l.b16 %v269
          %v306 = vunpack.c.l.b16 %v270
          %v307 = vunpack.c.l.b16 %v271
          %v308 = vpack.c.b16 %v297, %v296
          %v309 = vpack.c.b16 %v299, %v298
          %v310 = vpack.c.b16 %v301, %v300
          %v311 = vpack.c.b16 %v303, %v302
          %v312 = vpack.c.b16 %v305, %v304
          %v313 = vpack.c.b16 %v307, %v306
          %v326 = vunpack.c.l.b16 %v272
          %v327 = vunpack.c.l.b16 %v273
          %v328 = vunpack.c.l.b16 %v274
          %v329 = vunpack.c.l.b16 %v275
          %v330 = vunpack.c.l.b16 %v276
          %v331 = vunpack.c.l.b16 %v277
          %v332 = vunpack.c.l.b16 %v278
          %v333 = vunpack.c.l.b16 %v279
          %v334 = vunpack.c.l.b16 %v280
          %v335 = vunpack.c.l.b16 %v281
          %v336 = vunpack.c.l.b16 %v282
          %v337 = vunpack.c.l.b16 %v283
          %v338 = vpack.c.b16 %v327, %v326
          %v339 = vpack.c.b16 %v329, %v328
          %v340 = vpack.c.b16 %v331, %v330
          %v341 = vpack.c.b16 %v333, %v332
          %v342 = vpack.c.b16 %v335, %v334
          %v343 = vpack.c.b16 %v337, %v336
          %vm349 = vcmask 752640
          %v351 = vsel %vm349, %v308, 0
          %v354 = vsel %vm349, %v309, 0
          %v357 = vsel %vm349, %v310, 0
          %v360 = vsel %vm349, %v311, 0
          %v363 = vsel %vm349, %v312, 0
          %v366 = vsel %vm349, %v313, 0
          %vm368 = vcmask 1045504
          %v370 = vsel %vm368, %v343, 0
          %372 = vmatprep.subr.bf16.mxu0 0
          %373 = vmatpush1.bf16.msra.mxu0 %v338
          %374 = vmatprep.subr.bf16.mxu0 0
          %375 = vmatpush1.bf16.msra.mxu0 %v339
          %376 = vmatprep.subr.bf16.mxu0 0
          %377 = vmatpush1.bf16.msra.mxu0 %v340
          %378 = vmatprep.subr.bf16.mxu0 0
          %379 = vmatpush1.bf16.msra.mxu0 %v341
          %380 = vmatprep.subr.bf16.mxu0 0
          %381 = vmatpush1.bf16.msra.mxu0 %v342
          %382 = vmatprep.subr.bf16.mxu0 0
          %383 = vmatpush1.bf16.msra.mxu0 %v370
          %384 = vmatprep.subr.bf16.mxu0 0
          %385 = vmatpush1.bf16.msra.mxu0 0
          %386 = vmatprep.subr.bf16.mxu0 0
          %387 = vmatpush1.bf16.msra.mxu0 0
          %388 = vmatprep.subr.bf16.mxu0 0
          %389 = vmatpush1.bf16.msra.mxu0 0
          %390 = vmatprep.subr.bf16.mxu0 0
          %391 = vmatpush1.bf16.msra.mxu0 0
          %392 = vmatprep.subr.bf16.mxu0 0
          %393 = vmatpush1.bf16.msra.mxu0 0
          %394 = vmatprep.subr.bf16.mxu0 0
          %395 = vmatpush1.bf16.msra.mxu0 0
          %396 = vmatprep.subr.bf16.mxu0 0
          %397 = vmatpush1.bf16.msra.mxu0 0
          %398 = vmatprep.subr.bf16.mxu0 0
          %399 = vmatpush1.bf16.msra.mxu0 0
          %400 = vmatprep.subr.bf16.mxu0 0
          %401 = vmatpush1.bf16.msra.mxu0 0
          %402 = vmatprep.subr.bf16.mxu0 0
          %403 = vmatpush1.bf16.msra.mxu0 0
          %404 = vmatprep.mubr.bf16.mxu0 0
          %405 = vmatmul.mubr.bf16.gmra.mrb[0].mxu0 %v351
          %v406 = vpop.f32.mrb[0].mxu0
          %v407 = vadd.f32 0.0, %v406
          %v408 = vpop.f32.mrb[0].mxu0
          %v409 = vpop.f32.mrb[0].mxu0
          %v410 = vadd.f32 0.0, %v409
          %v411 = vpop.f32.mrb[0].mxu0
          %412 = vmatprep.mubr.bf16.mxu0 0
          %413 = vmatmul.mubr.bf16.gmra.mrb[0].mxu0 %v354
          %v414 = vpop.f32.mrb[0].mxu0
          %v415 = vadd.f32 0.0, %v414
          %v416 = vpop.f32.mrb[0].mxu0
          %v417 = vpop.f32.mrb[0].mxu0
          %v418 = vadd.f32 0.0, %v417
          %v419 = vpop.f32.mrb[0].mxu0
          %420 = vmatprep.mubr.bf16.mxu0 0
          %421 = vmatmul.mubr.bf16.gmra.mrb[0].mxu0 %v357
          %v422 = vpop.f32.mrb[0].mxu0
          %v423 = vadd.f32 0.0, %v422
          %v424 = vpop.f32.mrb[0].mxu0
          %v425 = vpop.f32.mrb[0].mxu0
          %v426 = vadd.f32 0.0, %v425
          %v427 = vpop.f32.mrb[0].mxu0
          %428 = vmatprep.mubr.bf16.mxu0 0
          %429 = vmatmul.mubr.bf16.gmra.mrb[0].mxu0 %v360
          %v430 = vpop.f32.mrb[0].mxu0
          %v431 = vadd.f32 0.0, %v430
          %v432 = vpop.f32.mrb[0].mxu0
          %v433 = vpop.f32.mrb[0].mxu0
          %v434 = vadd.f32 0.0, %v433
          %v435 = vpop.f32.mrb[0].mxu0
          %436 = vmatprep.mubr.bf16.mxu0 0
          %437 = vmatmul.mubr.bf16.gmra.mrb[0].mxu0 %v363
          %v438 = vpop.f32.mrb[0].mxu0
          %v439 = vadd.f32 0.0, %v438
          %v440 = vpop.f32.mrb[0].mxu0
          %v441 = vpop.f32.mrb[0].mxu0
          %v442 = vadd.f32 0.0, %v441
          %v443 = vpop.f32.mrb[0].mxu0
          %444 = vmatprep.mubr.bf16.mxu0 0
          %445 = vmatmul.mubr.bf16.gmra.mrb[0].mxu0 %v366
          %v446 = vpop.f32.mrb[0].mxu0
          %v447 = vadd.f32 0.0, %v446
          %v448 = vpop.f32.mrb[0].mxu0
          %v449 = vpop.f32.mrb[0].mxu0
          %v450 = vadd.f32 0.0, %v449
          %v451 = vpop.f32.mrb[0].mxu0
          %452 = vdwg.mxu0
          %s453 = smul.u32 %s27, 96
          %s454 = scalar_lea.vmem [#allocation6], %s453
          %455 = vst [vmem:[%s454] sm:$0xff] %v407
          %456 = vst [vmem:[%s454 + $0x8] sm:$0xff] %v410
          %457 = vst [vmem:[%s454 + $0x10] sm:$0xff] %v415
          %458 = vst [vmem:[%s454 + $0x18] sm:$0xff] %v418
          %459 = vst [vmem:[%s454 + $0x20] sm:$0xff] %v423
          %460 = vst [vmem:[%s454 + $0x28] sm:$0xff] %v426
          %461 = vst [vmem:[%s454 + $0x30] sm:$0xff] %v431
          %462 = vst [vmem:[%s454 + $0x38] sm:$0xff] %v434
          %463 = vst [vmem:[%s454 + $0x40] sm:$0xff] %v439
          %464 = vst [vmem:[%s454 + $0x48] sm:$0xff] %v442
          %465 = vst [vmem:[%s454 + $0x50] sm:$0xff] %v447
          %466 = vst [vmem:[%s454 + $0x58] sm:$0xff] %v450
          %p467 = scmp.eq.s32.totalorder %s27, 0
          // Predicated region
          $region49: #{tpu_custom_call.1} parent=47 // pred_check
            %p468 = pneg %p467
          $region50: #{tpu_custom_call.1} parent=47 // pred_check_branch
            %470 = sbr.rel (%p468) target = $region52
          $region51: #{tpu_custom_call.1} parent=47 // pred_region
            %471 = vst [vmem:[#allocation2] sm:$0x1] 0.0
            %472 = vst [vmem:[#allocation3] sm:$0x1] 0.0
          $region52: #{tpu_custom_call.1} parent=47 // pred_fallthru
            _
          %v473 = vld [vmem:[#allocation2] sm:$0x1]
          %v474 = vadd.f32 %v407, %v410
          %v475 = vadd.f32 %v474, %v415
          %v476 = vadd.f32 %v475, %v418
          %v477 = vadd.f32 %v476, %v423
          %v478 = vadd.f32 %v477, %v426
          %v479 = vadd.f32 %v478, %v431
          %v480 = vadd.f32 %v479, %v434
          %v481 = vadd.f32 %v480, %v439
          %v482 = vadd.f32 %v481, %v442
          %v483 = vadd.f32 %v482, %v447
          %v484 = vadd.f32 %v483, %v450
          %v485 = vrot.slane %v484, 4
          %v486 = vadd.f32 %v484, %v485
          %v487 = vrot.slane %v486, 2
          %v488 = vadd.f32 %v486, %v487
          %v489 = vrot.slane %v488, 1
          %v490 = vadd.f32 %v488, %v489
          %v491 = vadd.f32 %v473, %v490
          %492 = vst [vmem:[#allocation2] sm:$0x1] %v491
          %v493 = vld [vmem:[#allocation3] sm:$0x1]
          %v494 = vmul.f32 %v407, %v407
          %v495 = vmul.f32 %v410, %v410
          %v496 = vmul.f32 %v415, %v415
          %v497 = vmul.f32 %v418, %v418
          %v498 = vmul.f32 %v423, %v423
          %v499 = vmul.f32 %v426, %v426
          %v500 = vmul.f32 %v431, %v431
          %v501 = vmul.f32 %v434, %v434
          %v502 = vmul.f32 %v439, %v439
          %v503 = vmul.f32 %v442, %v442
          %v504 = vmul.f32 %v447, %v447
          %v505 = vmul.f32 %v450, %v450
          %v506 = vadd.f32 %v494, %v495
          %v507 = vadd.f32 %v506, %v496
          %v508 = vadd.f32 %v507, %v497
          %v509 = vadd.f32 %v508, %v498
          %v510 = vadd.f32 %v509, %v499
          %v511 = vadd.f32 %v510, %v500
          %v512 = vadd.f32 %v511, %v501
          %v513 = vadd.f32 %v512, %v502
          %v514 = vadd.f32 %v513, %v503
          %v515 = vadd.f32 %v514, %v504
          %v516 = vadd.f32 %v515, %v505
          %v517 = vrot.slane %v516, 4
          %v518 = vadd.f32 %v516, %v517
          %v519 = vrot.slane %v518, 2
          %v520 = vadd.f32 %v518, %v519
          %v521 = vrot.slane %v520, 1
          %v522 = vadd.f32 %v520, %v521
          %v523 = vadd.f32 %v493, %v522
          %524 = vst [vmem:[#allocation3] sm:$0x1] %v523
        $region48: #{tpu_custom_call.1} parent=35 // pred_fallthru
          _
        %p525 = scmp.eq.s32.totalorder %s26, 1
        // Predicated region
        $region53: #{tpu_custom_call.1} parent=35 // pred_check
          %p526 = pneg %p525
        $region54: #{tpu_custom_call.1} parent=35 // pred_check_branch
          %528 = sbr.rel (%p526) target = $region56
        $region55: #{tpu_custom_call.1} parent=35 // pred_region
          %p529 = scmp.eq.s32.totalorder %s27, 0
          // Predicated region
          $region57: #{tpu_custom_call.1} parent=55 // pred_check
            %p530 = pneg %p529
          $region58: #{tpu_custom_call.1} parent=55 // pred_check_branch
            %532 = sbr.rel (%p530) target = $region60
          $region59: #{tpu_custom_call.1} parent=55 // pred_region
            %v533 = vld [vmem:[#allocation2] sm:$0x1]
            %v534 = vmul.f32 %v533, 0.011904762
            %v535 = vld [vmem:[#allocation3] sm:$0x1]
            %v536 = vmul.f32 %v535, 0.011904762
            %v537 = vmul.f32 %v534, %v534
            %v538 = vsub.f32 %v536, %v537
            %v539 = vmax.f32 %v538, 0.0
            %v540 = vld [vmem:[%s2] sm:$0x1]
            %v541 = vadd.f32 %v539, 1e-05
            %v542 = vrsqrt.pop %v541
            %v543 = vmul.f32 %v540, %v542
            %544 = vst [vmem:[#allocation4] sm:$0x1] %v543
            %v545 = vld [vmem:[%s3] sm:$0x1]
            %v546 = vmul.f32 %v543, %v534
            %v547 = vsub.f32 %v545, %v546
            %548 = vst [vmem:[#allocation5] sm:$0x1] %v547
          $region60: #{tpu_custom_call.1} parent=55 // pred_fallthru
            _
          %s549 = smul.u32 %s27, 96
          %s550 = scalar_lea.vmem [#allocation6], %s549
          %v551 = vld [vmem:[%s550] sm:$0xff]
          %v552 = vld [vmem:[%s550 + $0x8] sm:$0xff]
          %v553 = vld [vmem:[%s550 + $0x10] sm:$0xff]
          %v554 = vld [vmem:[%s550 + $0x18] sm:$0xff]
          %v555 = vld [vmem:[%s550 + $0x20] sm:$0xff]
          %v556 = vld [vmem:[%s550 + $0x28] sm:$0xff]
          %v557 = vld [vmem:[%s550 + $0x30] sm:$0xff]
          %v558 = vld [vmem:[%s550 + $0x38] sm:$0xff]
          %v559 = vld [vmem:[%s550 + $0x40] sm:$0xff]
          %v560 = vld [vmem:[%s550 + $0x48] sm:$0xff]
          %v561 = vld [vmem:[%s550 + $0x50] sm:$0xff]
          %v562 = vld [vmem:[%s550 + $0x58] sm:$0xff]
          %v563 = vld [vmem:[#allocation4] sm:$0x1]
          %v564 = vld [vmem:[#allocation5] sm:$0x1]
          %v566 = vlaneseq
          %v567 = vshrl.u32 %v566, 7
          %v568 = vsub.s32 0, %v567
          %v569 = vrot.slane %v563, %v568
          %v571 = vmul.f32 %v551, %v569
          %v572 = vmul.f32 %v552, %v569
          %v573 = vmul.f32 %v553, %v569
          %v574 = vmul.f32 %v554, %v569
          %v575 = vmul.f32 %v555, %v569
          %v576 = vmul.f32 %v556, %v569
          %v577 = vmul.f32 %v557, %v569
          %v578 = vmul.f32 %v558, %v569
          %v579 = vmul.f32 %v559, %v569
          %v580 = vmul.f32 %v560, %v569
          %v581 = vmul.f32 %v561, %v569
          %v582 = vmul.f32 %v562, %v569
          %v584 = vlaneseq
          %v585 = vshrl.u32 %v584, 7
          %v586 = vsub.s32 0, %v585
          %v587 = vrot.slane %v564, %v586
          %v589 = vadd.f32 %v571, %v587
          %v590 = vadd.f32 %v572, %v587
          %v591 = vadd.f32 %v573, %v587
          %v592 = vadd.f32 %v574, %v587
          %v593 = vadd.f32 %v575, %v587
          %v594 = vadd.f32 %v576, %v587
          %v595 = vadd.f32 %v577, %v587
          %v596 = vadd.f32 %v578, %v587
          %v597 = vadd.f32 %v579, %v587
          %v598 = vadd.f32 %v580, %v587
          %v599 = vadd.f32 %v581, %v587
          %v600 = vadd.f32 %v582, %v587
          %v601 = vmax.f32 %v589, 0.0
          %v602 = vmax.f32 %v590, 0.0
          %v603 = vmax.f32 %v591, 0.0
          %v604 = vmax.f32 %v592, 0.0
          %v605 = vmax.f32 %v593, 0.0
          %v606 = vmax.f32 %v594, 0.0
          %v607 = vmax.f32 %v595, 0.0
          %v608 = vmax.f32 %v596, 0.0
          %v609 = vmax.f32 %v597, 0.0
          %v610 = vmax.f32 %v598, 0.0
          %v611 = vmax.f32 %v599, 0.0
          %v612 = vmax.f32 %v600, 0.0
          %v613 = vadd.f32 %v601, %v602
          %v614 = vadd.f32 %v613, %v603
          %v615 = vadd.f32 %v614, %v604
          %v616 = vadd.f32 %v615, %v605
          %v617 = vadd.f32 %v616, %v606
          %v618 = vrot.slane %v617, 4
          %v619 = vadd.f32 %v617, %v618
          %v620 = vrot.slane %v619, 2
          %v621 = vadd.f32 %v619, %v620
          %v622 = vrot.slane %v621, 1
          %v623 = vadd.f32 %v621, %v622
          %v624 = vadd.f32 %v607, %v608
          %v625 = vadd.f32 %v624, %v609
          %v626 = vadd.f32 %v625, %v610
          %v627 = vadd.f32 %v626, %v611
          %v628 = vadd.f32 %v627, %v612
          %v629 = vrot.slane %v628, 4
          %v630 = vadd.f32 %v628, %v629
          %v631 = vrot.slane %v630, 2
          %v632 = vadd.f32 %v630, %v631
          %v633 = vrot.slane %v632, 1
          %v634 = vadd.f32 %v632, %v633
          %v635 = vmax.f32 %v564, 0.0
          %v636 = vmul.f32 %v635, 6.0
          %v638 = vlaneseq
          %v639 = vshrl.u32 %v638, 7
          %v640 = vsub.s32 0, %v639
          %v641 = vrot.slane %v636, %v640
          %v643 = vsub.f32 %v623, %v641
          %v644 = vsub.f32 %v634, %v641
          %v645 = vmul.f32 %v643, 0.023809524
          %v646 = vmul.f32 %v644, 0.023809524
          %v649 = vrot.slane %v646, 7
          %vm650 = vcmask 1041409
          %v651 = vsel %vm650, %v649, %v645
          %653 = vst [vmem:[%s250] sm:$0x3] %v651
        $region56: #{tpu_custom_call.1} parent=35 // pred_fallthru
          _
        %s654 = sand.u32 %s137, 1
        %s655 = scalar_lea.sflag [#allocation9], %s654
        %s656 = sand.u32 %s137, 1
        %s657 = smul.addr %s656, 2
        %s658 = scalar_lea.vmem [#allocation12], %s657
        // Predicated region
        $region61: #{tpu_custom_call.1} parent=35 // pred_check
          %p659 = pneg %p147
        $region62: #{tpu_custom_call.1} parent=35 // pred_check_branch
          %661 = sbr.rel (%p659) target = $region64
        $region63: #{tpu_custom_call.1} parent=35 // pred_region
          %s662 = smul.u32 %s26, %s27
          %s664 = ssub.s32 32, 32
          %665 = vsyncadd %s655, %s664
          %s666 = smul.addr %s662, 32
          %s667 = scalar_lea.hbm %s4, %s666
          %s669 = sshll.u32 %s658, 4
          %s670 = int_to_ptr.vmem [resolvable:$true] %s669
          %672 = dma.vmem_to_hbm [thread:$0]  %s670, 32, %s667, %s655
        $region64: #{tpu_custom_call.1} parent=35 // pred_fallthru
          _
      $region36: #{tpu_custom_call.1} parent=5 // pred_fallthru
        _
      %p673 = scmp.le.s32.totalorder 2, %s17
      // Predicated region
      $region65: #{tpu_custom_call.1} parent=5 // pred_check
        %p674 = pneg %p673
      $region66: #{tpu_custom_call.1} parent=5 // pred_check_branch
        %676 = sbr.rel (%p674) target = $region68
      $region67: #{tpu_custom_call.1} parent=5 // pred_region
        %s677 = ssub.s32 %s17, 2
        // Predicated region
        $region69: #{tpu_custom_call.1} parent=67 // pred_check
          %p678 = pneg %p153
        $region70: #{tpu_custom_call.1} parent=67 // pred_check_branch
          %680 = sbr.rel (%p678) target = $region72
        $region71: #{tpu_custom_call.1} parent=67 // pred_region
          %s681 = sand.u32 %s138, 1
          %s682 = scalar_lea.sflag [#allocation9], %s681
          %s683 = sand.u32 %s138, 1
          %s684 = smul.addr %s683, 2
          %s685 = scalar_lea.vmem [#allocation12], %s684
          %686 = dma.done %s682, 32
        $region72: #{tpu_custom_call.1} parent=67 // pred_fallthru
          _
      $region68: #{tpu_custom_call.1} parent=5 // pred_fallthru
        _
    $region6: #{tpu_custom_call.1} parent=1 // loop_footer
      %s21 = sadd.s32 1, %s17
    $region7: #{tpu_custom_call.1} parent=1 // loop_footer_branch
      %16 = sbr.rel target = $region3
    $region8: #{tpu_custom_call.1} parent=1 // loop_exit
      _
    %687 = vsyncpa [#allocation8], 1
    %s688 = scalar_lea.sflag [#allocation8], 1
    %689 = vsyncpa %s688, 1
    %690 = vsyncpa [#allocation11], 1
    %691 = vsyncpa [#allocation9], 1
    %s692 = scalar_lea.sflag [#allocation9], 1
    %693 = vsyncpa %s692, 1

</llo_original>
